<compile_context>
chip_gen: v7x
topology: tpu7x:2x2x1
jax: 0.10.0
libtpu: 0.0.40
codegen_flags: <defaults>
</compile_context>

<pallas_src>
import functools
import math

import jax
import jax.numpy as jnp
import numpy as np
from jax.experimental import pallas as pl
from jax.experimental.pallas import tpu as pltpu

VMEM_LIMIT = 32 * 1024 * 1024  # safe on v5e/v6e (128 MiB phys) and v7x (64 MiB phys)


def _pick_tile(total, target):
    """Largest multiple of 8 that divides `total` and is <= target (else `total`)."""
    if total <= target:
        return total
    for t in range(target, 7, -1):
        if total % t == 0 and t % 8 == 0:
            return t
    return total


# ---------------------------------------------------------------------------
# Kernel A: 1x1 conv as tiled matmul, fused with folded BN (+ optional ReLU)
# ---------------------------------------------------------------------------
def _pw_bn_kernel(x_ref, w_ref, s_ref, b_ref, o_ref, *, relu):
    y = jnp.dot(x_ref[...], w_ref[...], preferred_element_type=jnp.float32)
    y = y * s_ref[...] + b_ref[...]
    if relu:
        y = jnp.maximum(y, 0.0)
    o_ref[...] = y.astype(o_ref.dtype)


def pointwise_conv_bn(x2d, w, scale, bias, relu, block_m=256, block_n=128):
    # block_m=512..1024 for production; 256 here so the small test exercises the pipeline.
    M, Cin = x2d.shape
    Cout = w.shape[1]
    tm = min(block_m, M)
    tn = Cout if Cout <= block_n else block_n
    grid = (pl.cdiv(M, tm), pl.cdiv(Cout, tn))
    return pl.pallas_call(
        functools.partial(_pw_bn_kernel, relu=relu),
        out_shape=jax.ShapeDtypeStruct((M, Cout), jnp.float32),
        grid=grid,
        in_specs=[
            pl.BlockSpec((tm, Cin), lambda i, j: (i, 0)),
            pl.BlockSpec((Cin, tn), lambda i, j: (0, j)),
            pl.BlockSpec((1, tn), lambda i, j: (0, j)),
            pl.BlockSpec((1, tn), lambda i, j: (0, j)),
        ],
        out_specs=pl.BlockSpec((tm, tn), lambda i, j: (i, j)),
        compiler_params=pltpu.CompilerParams(
            dimension_semantics=("parallel", "parallel"),
            vmem_limit_bytes=VMEM_LIMIT),
    )(x2d, w, scale, bias)


# ---------------------------------------------------------------------------
# Kernel B: grouped 3x3 conv (stride=1, pad=1) + folded BN + ReLU
#   - in-kernel 9-tap accumulation on the flattened padded image (no HBM im2col)
#   - block-diagonal per-tap weights -> lane-dense DC-wide output, NHWC order
# ---------------------------------------------------------------------------
def _gconv_bn_relu_kernel(x_ref, w_ref, s_ref, b_ref, o_ref, acc_ref, *, H, W):
    Wp = W + 2
    L = H * Wp                       # padded-width row length (2 junk cols per row)
    acc_ref[...] = jnp.zeros_like(acc_ref)
    for t in range(9):               # static unroll over the 3x3 taps
        ki, kj = divmod(t, 3)
        off = ki * Wp + kj           # contiguous slab of the flattened padded image
        acc_ref[...] += jnp.dot(x_ref[0, off:off + L, :], w_ref[t],
                                preferred_element_type=jnp.float32)
    # BN + ReLU + compaction (drop the 2 junk columns of each spatial row).
    for h in range(H):
        row = acc_ref[h * Wp:h * Wp + W, :] * s_ref[...] + b_ref[...]
        o_ref[0, h * W:(h + 1) * W, :] = jnp.maximum(row, 0.0).astype(o_ref.dtype)


def grouped_conv3x3_bn_relu_s1(x_nhwc, w_bd, scale, bias):
    N, H, W, DC = x_nhwc.shape
    Wp, HW = W + 2, H * W
    L = H * Wp
    # 1 row top / 2 rows bottom (extra zero row keeps every tap's contiguous slab
    # in-bounds), 1 col left/right; flatten spatial row-major (free reshape).
    xp = jnp.pad(x_nhwc, ((0, 0), (1, 2), (1, 1), (0, 0)))
    xf = xp.reshape(N, (H + 3) * Wp, DC)
    kern = functools.partial(_gconv_bn_relu_kernel, H=H, W=W)
    return pl.pallas_call(
        kern,
        out_shape=jax.ShapeDtypeStruct((N, HW, DC), jnp.float32),
        grid=(N,),
        in_specs=[
            pl.BlockSpec((1, (H + 3) * Wp, DC), lambda n: (n, 0, 0)),
            pl.BlockSpec((9, DC, DC), lambda n: (0, 0, 0)),
            pl.BlockSpec((1, DC), lambda n: (0, 0)),
            pl.BlockSpec((1, DC), lambda n: (0, 0)),
        ],
        out_specs=pl.BlockSpec((1, HW, DC), lambda n: (n, 0, 0)),
        scratch_shapes=[pltpu.VMEM((L, DC), jnp.float32)],
        compiler_params=pltpu.CompilerParams(
            dimension_semantics=("parallel",),
            vmem_limit_bytes=VMEM_LIMIT),
    )(xf, w_bd, scale, bias)


# ---------------------------------------------------------------------------
# Kernel C: conv3 (1x1) + folded BN, fused with the SE global-average-pool
#   grid=(N, HW/t); pooled channel sums accumulate across the "arbitrary" HW axis.
# ---------------------------------------------------------------------------
def _conv3_bn_pool_kernel(x_ref, w_ref, s_ref, b_ref, y_ref, p_ref):
    @pl.when(pl.program_id(1) == 0)
    def _():
        p_ref[...] = jnp.zeros_like(p_ref)
    y = jnp.dot(x_ref[0], w_ref[...], preferred_element_type=jnp.float32)
    y = y * s_ref[...] + b_ref[...]
    y_ref[0] = y.astype(y_ref.dtype)
    p_ref[0] += jnp.sum(y, axis=0, keepdims=True)


def conv3_bn_pool(x3, w, scale, bias, t_hw=128):
    N, HW, DC = x3.shape
    Cout = w.shape[1]
    t = _pick_tile(HW, t_hw)
    return pl.pallas_call(
        _conv3_bn_pool_kernel,
        out_shape=(jax.ShapeDtypeStruct((N, HW, Cout), jnp.float32),
                   jax.ShapeDtypeStruct((N, 1, Cout), jnp.float32)),
        grid=(N, HW // t),
        in_specs=[
            pl.BlockSpec((1, t, DC), lambda n, k: (n, k, 0)),
            pl.BlockSpec((DC, Cout), lambda n, k: (0, 0)),
            pl.BlockSpec((1, Cout), lambda n, k: (0, 0)),
            pl.BlockSpec((1, Cout), lambda n, k: (0, 0)),
        ],
        out_specs=(pl.BlockSpec((1, t, Cout), lambda n, k: (n, k, 0)),
                   pl.BlockSpec((1, 1, Cout), lambda n, k: (n, 0, 0))),
        compiler_params=pltpu.CompilerParams(
            dimension_semantics=("parallel", "arbitrary"),
            vmem_limit_bytes=VMEM_LIMIT),
    )(x3, w, scale, bias)


# ---------------------------------------------------------------------------
# Kernel D: SE FCs + sigmoid + channel scale + residual add + final ReLU (tiled)
# ---------------------------------------------------------------------------
def _se_scale_res_kernel(y_ref, r_ref, p_ref, w1_ref, b1_ref, w2_ref, b2_ref,
                         o_ref, *, inv_hw):
    pooled = p_ref[0] * inv_hw                                   # (1, C) mean
    h = jnp.dot(pooled, w1_ref[...], preferred_element_type=jnp.float32) + b1_ref[...]
    h = jnp.maximum(h, 0.0)
    s = jax.nn.sigmoid(
        jnp.dot(h, w2_ref[...], preferred_element_type=jnp.float32) + b2_ref[...])
    o_ref[0] = jnp.maximum(y_ref[0] * s + r_ref[0], 0.0).astype(o_ref.dtype)


def se_scale_residual_relu(y, res, pooled, fc1_w, fc1_b, fc2_w, fc2_b, t_hw=128):
    N, HW, C = y.shape
    hid = fc1_w.shape[1]
    t = _pick_tile(HW, t_hw)
    kern = functools.partial(_se_scale_res_kernel, inv_hw=1.0 / float(HW))
    return pl.pallas_call(
        kern,
        out_shape=jax.ShapeDtypeStruct((N, HW, C), jnp.float32),
        grid=(N, HW // t),
        in_specs=[
            pl.BlockSpec((1, t, C), lambda n, k: (n, k, 0)),
            pl.BlockSpec((1, t, C), lambda n, k: (n, k, 0)),
            pl.BlockSpec((1, 1, C), lambda n, k: (n, 0, 0)),
            pl.BlockSpec((C, hid), lambda n, k: (0, 0)),
            pl.BlockSpec((1, hid), lambda n, k: (0, 0)),
            pl.BlockSpec((hid, C), lambda n, k: (0, 0)),
            pl.BlockSpec((1, C), lambda n, k: (0, 0)),
        ],
        out_specs=pl.BlockSpec((1, t, C), lambda n, k: (n, k, 0)),
        compiler_params=pltpu.CompilerParams(
            dimension_semantics=("parallel", "parallel"),
            vmem_limit_bytes=VMEM_LIMIT),
    )(y, res, pooled, fc1_w, fc1_b, fc2_w, fc2_b)


# ---------------------------------------------------------------------------
# Full SEBottleneck forward (wrapper, NCHW in / NCHW out)
# ---------------------------------------------------------------------------
def fold_bn(gamma, beta, mean, var, eps=1e-5):
    scale = gamma / jnp.sqrt(var + eps)
    bias = beta - mean * scale
    return scale, bias


def se_bottleneck_forward(x_nchw, p):
    N, Cin, H, W = x_nchw.shape
    DC = p["w1"].shape[1]
    Cout = p["w3"].shape[1]
    # TODO(synk): downsample/projection shortcut and stride>1 not implemented.
    assert p["stride"] == 1 and Cin == Cout, "only stride=1, no-downsample supported"

    x = jnp.transpose(x_nchw, (0, 2, 3, 1))                 # NHWC (single HBM transpose)
    M = N * H * W

    # conv1 (1x1) + bn1 + relu
    t = pointwise_conv_bn(x.reshape(M, Cin), p["w1"], p["s1"], p["b1"], relu=True)
    t = t.reshape(N, H, W, DC)

    # conv2 (3x3 grouped, stride=1, pad=1) + bn2 + relu  -> (N, HW, DC)
    t = grouped_conv3x3_bn_relu_s1(t, p["w2bd"], p["s2"], p["b2"])

    # conv3 (1x1) + bn3, fused with SE global average pool
    y, pooled = conv3_bn_pool(t, p["w3"], p["s3"], p["b3"])

    # SE FCs + sigmoid + channel scale + residual add + final relu
    res = x.reshape(N, H * W, Cin)
    out = se_scale_residual_relu(y, res, pooled,
                                 p["fc1_w"], p["fc1_b"], p["fc2_w"], p["fc2_b"])
    out = out.reshape(N, H, W, Cout)
    return jnp.transpose(out, (0, 3, 1, 2))                 # back to NCHW


# ---------------------------------------------------------------------------
# Pure-JAX reference (mirrors the PyTorch forward, BN in eval mode)
# ---------------------------------------------------------------------------
def _conv(x, w, stride=1, padding=0, groups=1):
    return jax.lax.conv_general_dilated(
        x, w, window_strides=(stride, stride),
        padding=[(padding, padding), (padding, padding)],
        dimension_numbers=("NCHW", "OIHW", "NCHW"),
        feature_group_count=groups)


def _bn(x, g, b, m, v, eps=1e-5):
    sh = (1, -1, 1, 1)
    return (x - m.reshape(sh)) / jnp.sqrt(v.reshape(sh) + eps) * g.reshape(sh) + b.reshape(sh)


def reference_forward(x, raw, stride, groups):
    out = jax.nn.relu(_bn(_conv(x, raw["c1"]), *raw["bn1"]))
    out = jax.nn.relu(_bn(_conv(out, raw["c2"], stride=stride, padding=1, groups=groups),
                          *raw["bn2"]))
    out = _bn(_conv(out, raw["c3"]), *raw["bn3"])
    pooled = jnp.mean(out, axis=(2, 3))                                  # (N, C)
    h = jax.nn.relu(pooled @ raw["fc1_w"].T + raw["fc1_b"])
    s = jax.nn.sigmoid(h @ raw["fc2_w"].T + raw["fc2_b"])                # (N, C)
    out = out * s[:, :, None, None]
    out = out + x
    return jax.nn.relu(out)


# ---------------------------------------------------------------------------
# Deterministic parameter construction (PyTorch layouts), then kernel layouts
# ---------------------------------------------------------------------------
def make_params(key, inplanes, planes, baseWidth, cardinality, stride, reduction):
    assert stride == 1, "only stride=1 / no-downsample supported"
    D = int(math.floor(planes * (baseWidth / 64)))
    C = cardinality
    DC = D * C
    Cout = planes * 4
    hid = Cout // reduction
    ks = jax.random.split(key, 10)

    def nrm(k, shape, sc=0.1):
        return sc * jax.random.normal(k, shape, dtype=jnp.float32)

    def bn_params(k, n):
        k1, k2, k3, k4 = jax.random.split(k, 4)
        gamma = jax.random.uniform(k1, (n,), minval=0.5, maxval=1.5)
        beta = 0.1 * jax.random.normal(k2, (n,))
        mean = 0.1 * jax.random.normal(k3, (n,))
        var = jax.random.uniform(k4, (n,), minval=0.5, maxval=1.5)
        return gamma, beta, mean, var

    raw = {
        "c1": nrm(ks[0], (DC, inplanes, 1, 1)),
        "c2": nrm(ks[1], (DC, D, 3, 3)),
        "c3": nrm(ks[2], (Cout, DC, 1, 1)),
        "bn1": bn_params(ks[3], DC),
        "bn2": bn_params(ks[4], DC),
        "bn3": bn_params(ks[5], Cout),
        "fc1_w": nrm(ks[6], (hid, Cout)),
        "fc1_b": 0.1 * jax.random.normal(ks[7], (hid,)),
        "fc2_w": nrm(ks[8], (Cout, hid)),
        "fc2_b": 0.1 * jax.random.normal(ks[9], (Cout,)),
    }

    s1, b1 = fold_bn(*raw["bn1"])
    s2, b2 = fold_bn(*raw["bn2"])
    s3, b3 = fold_bn(*raw["bn3"])

    # Block-diagonal per-tap weights for the grouped 3x3 conv: (9, DC_in, DC_out).
    # (Packs all groups into one DC-wide, lane-dense matmul per tap.)
    w2 = raw["c2"].reshape(C, D, D, 3, 3)            # (G, dout, din, kh, kw)
    w2 = jnp.transpose(w2, (3, 4, 0, 2, 1))          # (kh, kw, G, din, dout)
    w2 = w2.reshape(9, C, D, D)
    w_bd = jnp.zeros((9, DC, DC), jnp.float32)
    for t in range(9):
        for g in range(C):
            w_bd = w_bd.at[t, g * D:(g + 1) * D, g * D:(g + 1) * D].set(w2[t, g])

    p = {
        "w1": raw["c1"].reshape(DC, inplanes).T,     # (Cin, DC)
        "s1": s1.reshape(1, DC), "b1": b1.reshape(1, DC),
        "w2bd": w_bd,                                # (9, DC, DC)
        "s2": s2.reshape(1, DC), "b2": b2.reshape(1, DC),
        "w3": raw["c3"].reshape(Cout, DC).T,         # (DC, Cout)
        "s3": s3.reshape(1, Cout), "b3": b3.reshape(1, Cout),
        "fc1_w": raw["fc1_w"].T, "fc1_b": raw["fc1_b"].reshape(1, hid),
        "fc2_w": raw["fc2_w"].T, "fc2_b": raw["fc2_b"].reshape(1, Cout),
        "stride": stride,
    }
    return p, raw


if __name__ == "__main__":
    # SEBottleneck(inplanes=16, planes=4, baseWidth=64, cardinality=2,
    #              stride=1, downsample=None, reduction=4)
    inplanes, planes, baseWidth, cardinality, stride, reduction = 16, 4, 64, 2, 1, 4
    N, H, W = 2, 16, 16

    key = jax.random.PRNGKey(0)
    kx, kp = jax.random.split(key)
    x = jax.random.normal(kx, (N, inplanes, H, W), dtype=jnp.float32)

    params, raw = make_params(kp, inplanes, planes, baseWidth, cardinality, stride, reduction)

    out = jax.block_until_ready(se_bottleneck_forward(x, params))

    ref = reference_forward(x, raw, stride, cardinality)
    np.testing.assert_allclose(np.asarray(out), np.asarray(ref), rtol=1e-4, atol=1e-4)

    print("KERNEL_OK")
</pallas_src>

<mosaic_0001>
module attributes {stable_mosaic.version = 11 : i64} {
  func.func @_pw_bn_kernel(%arg0: i32, %arg1: i32, %arg2: memref<256x16xf32, #tpu.memory_space<vmem>>, %arg3: memref<16x8xf32, #tpu.memory_space<vmem>>, %arg4: memref<1x8xf32, #tpu.memory_space<vmem>>, %arg5: memref<1x8xf32, #tpu.memory_space<vmem>>, %arg6: memref<256x8xf32, #tpu.memory_space<vmem>>) attributes {dimension_semantics = [#tpu.dimension_semantics<parallel>, #tpu.dimension_semantics<parallel>], iteration_bounds = array<i64: 2, 1>, scalar_prefetch = 0 : i64, scratch_operands = 0 : i64, tpu.core_type = #tpu.core_type<tc>, window_params = [{transform_indices = @transform_0, window_bounds = array<i64: 256, 16>}, {transform_indices = @transform_1, window_bounds = array<i64: 16, 8>}, {transform_indices = @transform_2, window_bounds = array<i64: 1, 8>}, {transform_indices = @transform_3, window_bounds = array<i64: 1, 8>}, {transform_indices = @transform_4, window_bounds = array<i64: 256, 8>}]} {
    %c0 = arith.constant 0 : index
    %c0_0 = arith.constant 0 : index
    %0 = vector.load %arg2[%c0, %c0_0] : memref<256x16xf32, #tpu.memory_space<vmem>>, vector<256x16xf32>
    %c0_1 = arith.constant 0 : index
    %c0_2 = arith.constant 0 : index
    %1 = vector.load %arg3[%c0_1, %c0_2] : memref<16x8xf32, #tpu.memory_space<vmem>>, vector<16x8xf32>
    %cst = arith.constant dense<0.000000e+00> : vector<256x8xf32>
    %2 = tpu.matmul %0, %1, %cst {dimension_numbers = #tpu.dot_dimension_numbers<[1], [0], [0], [1], [0, 0, 1, 1], [], []>} : vector<256x16xf32>, vector<16x8xf32>, vector<256x8xf32> -> vector<256x8xf32>
    %c0_3 = arith.constant 0 : index
    %c0_4 = arith.constant 0 : index
    %3 = vector.load %arg4[%c0_3, %c0_4] : memref<1x8xf32, #tpu.memory_space<vmem>>, vector<1x8xf32>
    %4 = vector.broadcast %3 : vector<1x8xf32> to vector<256x8xf32>
    %5 = arith.mulf %2, %4 : vector<256x8xf32>
    %c0_5 = arith.constant 0 : index
    %c0_6 = arith.constant 0 : index
    %6 = vector.load %arg5[%c0_5, %c0_6] : memref<1x8xf32, #tpu.memory_space<vmem>>, vector<1x8xf32>
    %7 = vector.broadcast %6 : vector<1x8xf32> to vector<256x8xf32>
    %8 = arith.addf %5, %7 : vector<256x8xf32>
    %cst_7 = arith.constant 0.000000e+00 : f32
    %9 = vector.broadcast %cst_7 : f32 to vector<256x8xf32>
    %10 = arith.maximumf %8, %9 : vector<256x8xf32>
    %c0_8 = arith.constant 0 : index
    %c0_9 = arith.constant 0 : index
    %11 = vector.load %arg6[%c0_8, %c0_9] : memref<256x8xf32, #tpu.memory_space<vmem>>, vector<256x8xf32>
    tpu.vector_store %arg6[%c0_8, %c0_9], %10 {strides = array<i32>} : memref<256x8xf32, #tpu.memory_space<vmem>>, vector<256x8xf32>,
    return
  }
  func.func @transform_0(%arg0: i32, %arg1: i32) -> (i32, i32) {
    %c0_i32 = arith.constant 0 : i32
    %c0_i32_0 = arith.constant 0 : i32
    return %arg0, %c0_i32 : i32, i32
  }
  func.func @transform_1(%arg0: i32, %arg1: i32) -> (i32, i32) {
    %c0_i32 = arith.constant 0 : i32
    %c0_i32_0 = arith.constant 0 : i32
    return %c0_i32, %arg1 : i32, i32
  }
  func.func @transform_2(%arg0: i32, %arg1: i32) -> (i32, i32) {
    %c0_i32 = arith.constant 0 : i32
    %c0_i32_0 = arith.constant 0 : i32
    return %c0_i32, %arg1 : i32, i32
  }
  func.func @transform_3(%arg0: i32, %arg1: i32) -> (i32, i32) {
    %c0_i32 = arith.constant 0 : i32
    %c0_i32_0 = arith.constant 0 : i32
    return %c0_i32, %arg1 : i32, i32
  }
  func.func @transform_4(%arg0: i32, %arg1: i32) -> (i32, i32) {
    %c0_i32 = arith.constant 0 : i32
    return %arg0, %arg1 : i32, i32
  }
}

</mosaic_0001>

<llo_original>
// kernel: tpu_custom_call.1
$region0: #{tpu_custom_call.1}
  #allocation0 [shape = 'u32[]', space=smem, size = 0x4, offset = 0x4, fixed_abs, tag = 'smem constant byte address 0x4 - core index']
  #allocation1 [shape = 'u32[144,128]{1,0:T(1,128)}', space=vmem, size = 0x12000, scoped, tag = 'internal scratch']
  %s0 = inlined_call_operand.vmem [shape: f32[512,16], index: 0, kind: input, shape index: {}]
  %s1 = inlined_call_operand.vmem [shape: f32[16,8], index: 1, kind: input, shape index: {}]
  %s2 = inlined_call_operand.vmem [shape: f32[1,8], index: 2, kind: input, shape index: {}]
  %s3 = inlined_call_operand.vmem [shape: f32[1,8], index: 3, kind: input, shape index: {}]
  %s4 = inlined_call_operand.vmem [shape: f32[512,8], index: 4, kind: output, shape index: {}]
  %s5 = sld [smem:[#allocation0]]
  $region49: #{tpu_custom_call.1} parent=0
    _
  %s7 = ssub.s32 1, %s5
  %s8 = scalar_select 0, %s7, %s5
  loop: start=0, step=1, limit=4
  $region2: #{tpu_custom_call.1} parent=0 // loop_pre_header
    _
  $region3: #{tpu_custom_call.1} parent=0 // loop_header
    %s10 = sphi 0, %s14
    %p11 = scmp.ge.s32.totalorder %s10, 4
    %s17 = sphi 0, %s29
    %s18 = sphi 0, %s25
    %s19 = sphi 0, %s17
    %s20 = sphi 0, %s18
    %s21 = sphi 0, %s19
    %s22 = sphi 0, %s20
    %s32 = sphi 0, %s34
    %s35 = sphi 0, %s32
    %s36 = sphi 0, %s35
    %s52 = sphi 0, %s36
    %s58 = sphi 0, %s60
    %s61 = sphi 0, %s58
    %s62 = sphi 0, %s61
    %s78 = sphi 0, %s62
    %s84 = sphi 0, %s86
    %s87 = sphi 0, %s84
    %s88 = sphi 0, %s87
    %s104 = sphi 0, %s88
    %s110 = sphi 0, %s112
    %s113 = sphi 0, %s110
    %s114 = sphi 0, %s113
    %s130 = sphi 0, %s114
    %s138 = sphi 0, %s140
    %s141 = sphi 0, %s138
    %s142 = sphi 0, %s141
    %s158 = sphi 0, %s142
  $region4: #{tpu_custom_call.1} parent=0 // loop_header_branch
    %13 = sbr.rel (%p11) target = $region8
  $region5: #{tpu_custom_call.1} parent=0 // loop_body
    %s15 = ssub.s32 %s10, 1
    %s16 = ssub.s32 %s10, 2
    %s23 = sadd.s32 1, %s18
    %p24 = scmp.ge.s32.totalorder %s23, 1
    %s25 = scalar_select %p24, 0, %s23
    %s26 = sadd.s32 1, %s17
    %s27 = scalar_select %p24, %s26, %s17
    %p28 = scmp.ge.s32.totalorder %s27, 2
    %s29 = scalar_select %p28, 0, %s27
    %s30 = ssub.s32 %s17, %s29
    %p31 = scmp.eq.s32.totalorder %s30, 0
    %s33 = sadd.s32 %s32, 1
    %s34 = scalar_select %p31, %s32, %s33
    %p37 = pneg %p31
    %p38 = scmp.eq.s32.totalorder %s10, 1
    %p39 = por %p37, %p38
    %p40 = scmp.ne.s32.totalorder %s32, %s35
    %p41 = scmp.eq.s32.totalorder %s10, 0
    %p42 = por %p40, %p41
    %p43 = scmp.ne.s32.totalorder %s32, %s35
    %p44 = scmp.eq.s32.totalorder %s15, 1
    %p45 = por %p43, %p44
    %p46 = scmp.ne.s32.totalorder %s35, %s36
    %p47 = scmp.eq.s32.totalorder %s15, 0
    %p48 = por %p46, %p47
    %p49 = scmp.ne.s32.totalorder %s35, %s36
    %p50 = scmp.eq.s32.totalorder %s16, 1
    %p51 = por %p49, %p50
    %p53 = scmp.ne.s32.totalorder %s36, %s52
    %p54 = scmp.eq.s32.totalorder %s16, 0
    %p55 = por %p53, %p54
    %s56 = ssub.s32 %s18, %s25
    %p57 = scmp.eq.s32.totalorder %s56, 0
    %s59 = sadd.s32 %s58, 1
    %s60 = scalar_select %p57, %s58, %s59
    %p63 = pneg %p57
    %p64 = scmp.eq.s32.totalorder %s10, 1
    %p65 = por %p63, %p64
    %p66 = scmp.ne.s32.totalorder %s58, %s61
    %p67 = scmp.eq.s32.totalorder %s10, 0
    %p68 = por %p66, %p67
    %p69 = scmp.ne.s32.totalorder %s58, %s61
    %p70 = scmp.eq.s32.totalorder %s15, 1
    %p71 = por %p69, %p70
    %p72 = scmp.ne.s32.totalorder %s61, %s62
    %p73 = scmp.eq.s32.totalorder %s15, 0
    %p74 = por %p72, %p73
    %p75 = scmp.ne.s32.totalorder %s61, %s62
    %p76 = scmp.eq.s32.totalorder %s16, 1
    %p77 = por %p75, %p76
    %p79 = scmp.ne.s32.totalorder %s62, %s78
    %p80 = scmp.eq.s32.totalorder %s16, 0
    %p81 = por %p79, %p80
    %s82 = ssub.s32 %s18, %s25
    %p83 = scmp.eq.s32.totalorder %s82, 0
    %s85 = sadd.s32 %s84, 1
    %s86 = scalar_select %p83, %s84, %s85
    %p89 = pneg %p83
    %p90 = scmp.eq.s32.totalorder %s10, 1
    %p91 = por %p89, %p90
    %p92 = scmp.ne.s32.totalorder %s84, %s87
    %p93 = scmp.eq.s32.totalorder %s10, 0
    %p94 = por %p92, %p93
    %p95 = scmp.ne.s32.totalorder %s84, %s87
    %p96 = scmp.eq.s32.totalorder %s15, 1
    %p97 = por %p95, %p96
    %p98 = scmp.ne.s32.totalorder %s87, %s88
    %p99 = scmp.eq.s32.totalorder %s15, 0
    %p100 = por %p98, %p99
    %p101 = scmp.ne.s32.totalorder %s87, %s88
    %p102 = scmp.eq.s32.totalorder %s16, 1
    %p103 = por %p101, %p102
    %p105 = scmp.ne.s32.totalorder %s88, %s104
    %p106 = scmp.eq.s32.totalorder %s16, 0
    %p107 = por %p105, %p106
    %s108 = ssub.s32 %s18, %s25
    %p109 = scmp.eq.s32.totalorder %s108, 0
    %s111 = sadd.s32 %s110, 1
    %s112 = scalar_select %p109, %s110, %s111
    %p115 = pneg %p109
    %p116 = scmp.eq.s32.totalorder %s10, 1
    %p117 = por %p115, %p116
    %p118 = scmp.ne.s32.totalorder %s110, %s113
    %p119 = scmp.eq.s32.totalorder %s10, 0
    %p120 = por %p118, %p119
    %p121 = scmp.ne.s32.totalorder %s110, %s113
    %p122 = scmp.eq.s32.totalorder %s15, 1
    %p123 = por %p121, %p122
    %p124 = scmp.ne.s32.totalorder %s113, %s114
    %p125 = scmp.eq.s32.totalorder %s15, 0
    %p126 = por %p124, %p125
    %p127 = scmp.ne.s32.totalorder %s113, %s114
    %p128 = scmp.eq.s32.totalorder %s16, 1
    %p129 = por %p127, %p128
    %p131 = scmp.ne.s32.totalorder %s114, %s130
    %p132 = scmp.eq.s32.totalorder %s16, 0
    %p133 = por %p131, %p132
    %s134 = ssub.s32 %s17, %s29
    %s135 = ssub.s32 %s18, %s25
    %s136 = sor.u32 %s134, %s135
    %p137 = scmp.eq.s32.totalorder %s136, 0
    %s139 = sadd.s32 %s138, 1
    %s140 = scalar_select %p137, %s138, %s139
    %p143 = pneg %p137
    %p144 = scmp.eq.s32.totalorder %s10, 1
    %p145 = por %p143, %p144
    %p146 = scmp.ne.s32.totalorder %s138, %s141
    %p147 = scmp.eq.s32.totalorder %s10, 0
    %p148 = por %p146, %p147
    %p149 = scmp.ne.s32.totalorder %s138, %s141
    %p150 = scmp.eq.s32.totalorder %s15, 1
    %p151 = por %p149, %p150
    %p152 = scmp.ne.s32.totalorder %s141, %s142
    %p153 = scmp.eq.s32.totalorder %s15, 0
    %p154 = por %p152, %p153
    %p155 = scmp.ne.s32.totalorder %s141, %s142
    %p156 = scmp.eq.s32.totalorder %s16, 1
    %p157 = por %p155, %p156
    %p159 = scmp.ne.s32.totalorder %s142, %s158
    %p160 = scmp.eq.s32.totalorder %s16, 0
    %p161 = por %p159, %p160
    %p162 = scmp.le.s32.totalorder 1, %s10
    %p163 = scmp.lt.s32.totalorder %s10, 3
    %p164 = pnand %p162, %p163
    %p165 = pneg %p164
    // Predicated region
    $region9: #{tpu_custom_call.1} parent=5 // pred_check
      _
    $region10: #{tpu_custom_call.1} parent=5 // pred_check_branch
      %167 = sbr.rel (%p164) target = $region12
    $region11: #{tpu_custom_call.1} parent=5 // pred_region
      %s168 = ssub.s32 %s10, 1
      // Predicated region
      $region13: #{tpu_custom_call.1} parent=11 // pred_check
        %p169 = pneg %p74
      $region14: #{tpu_custom_call.1} parent=11 // pred_check_branch
        %171 = sbr.rel (%p169) target = $region16
      $region15: #{tpu_custom_call.1} parent=11 // pred_region
        %p172 = scmp.lt.s32.totalorder %s20, 0
        %s173 = scalar_select %p172, %s20, 0
        %s174 = smul.addr %s173, 8
        %s175 = scalar_lea.vmem %s1, %s174
      $region16: #{tpu_custom_call.1} parent=11 // pred_fallthru
        _
      // Predicated region
      $region17: #{tpu_custom_call.1} parent=11 // pred_check
        %p176 = pneg %p100
      $region18: #{tpu_custom_call.1} parent=11 // pred_check_branch
        %178 = sbr.rel (%p176) target = $region20
      $region19: #{tpu_custom_call.1} parent=11 // pred_region
        %p179 = scmp.lt.s32.totalorder %s20, 0
        %s180 = scalar_select %p179, %s20, 0
        %s181 = scalar_lea.vmem %s2, %s180
      $region20: #{tpu_custom_call.1} parent=11 // pred_fallthru
        _
      // Predicated region
      $region21: #{tpu_custom_call.1} parent=11 // pred_check
        %p182 = pneg %p126
      $region22: #{tpu_custom_call.1} parent=11 // pred_check_branch
        %184 = sbr.rel (%p182) target = $region24
      $region23: #{tpu_custom_call.1} parent=11 // pred_region
        %p185 = scmp.lt.s32.totalorder %s20, 0
        %s186 = scalar_select %p185, %s20, 0
        %s187 = scalar_lea.vmem %s3, %s186
      $region24: #{tpu_custom_call.1} parent=11 // pred_fallthru
        _
    $region12: #{tpu_custom_call.1} parent=5 // pred_fallthru
      _
    %p188 = scmp.lt.s32.totalorder %s10, 2
    // Predicated region
    $region25: #{tpu_custom_call.1} parent=5 // pred_check
      %p189 = pneg %p188
    $region26: #{tpu_custom_call.1} parent=5 // pred_check_branch
      %191 = sbr.rel (%p189) target = $region28
    $region27: #{tpu_custom_call.1} parent=5 // pred_region
      // Predicated region
      $region29: #{tpu_custom_call.1} parent=27 // pred_check
        %p192 = pneg %p42
      $region30: #{tpu_custom_call.1} parent=27 // pred_check_branch
        %194 = sbr.rel (%p192) target = $region32
      $region31: #{tpu_custom_call.1} parent=27 // pred_region
        %s195 = smul.u32 32, %s17
        %p196 = scmp.lt.s32.totalorder %s195, 63
        %s197 = scalar_select %p196, %s195, 63
        %s198 = smul.addr %s197, 8
        %s199 = scalar_lea.vmem %s0, %s198
        %s200 = smul.u32 32, %s17
      $region32: #{tpu_custom_call.1} parent=27 // pred_fallthru
        _
    $region28: #{tpu_custom_call.1} parent=5 // pred_fallthru
      _
    %p201 = scmp.le.s32.totalorder 1, %s10
    %p202 = scmp.lt.s32.totalorder %s10, 3
    %p203 = pnand %p201, %p202
    %p204 = pneg %p203
    // Predicated region
    $region33: #{tpu_custom_call.1} parent=5 // pred_check
      _
    $region34: #{tpu_custom_call.1} parent=5 // pred_check_branch
      %206 = sbr.rel (%p203) target = $region36
    $region35: #{tpu_custom_call.1} parent=5 // pred_region
      %s207 = ssub.s32 %s10, 1
      %s208 = smul.u32 32, %s19
      %p209 = scmp.lt.s32.totalorder %s208, 63
      %s210 = scalar_select %p209, %s208, 63
      %s211 = smul.addr %s210, 8
      %s212 = scalar_lea.vmem %s0, %s211
      %p213 = pneg %p48
      %p214 = pneg %p45
      %p215 = scmp.lt.s32.totalorder %s20, 0
      %s216 = scalar_select %p215, %s20, 0
      %s217 = smul.addr %s216, 8
      %s218 = scalar_lea.vmem %s1, %s217
      %p219 = pneg %p74
      %p220 = pneg %p71
      %p221 = scmp.lt.s32.totalorder %s20, 0
      %s222 = scalar_select %p221, %s20, 0
      %s223 = scalar_lea.vmem %s2, %s222
      %p224 = pneg %p100
      %p225 = pneg %p97
      %p226 = scmp.lt.s32.totalorder %s20, 0
      %s227 = scalar_select %p226, %s20, 0
      %s228 = scalar_lea.vmem %s3, %s227
      %p229 = pneg %p126
      %p230 = pneg %p123
      %p231 = pneg %p154
      %p232 = pneg %p151
      %s233 = smul.u32 32, %s19
      %p234 = scmp.lt.s32.totalorder %s233, 63
      %s235 = scalar_select %p234, %s233, 63
      %p236 = scmp.lt.s32.totalorder %s20, 0
      %s237 = scalar_select %p236, %s20, 0
      %s238 = sadd.s32 %s237, %s235
      %s239 = smul.addr %s238, 8
      %s240 = scalar_lea.vmem %s4, %s239
      %s241 = smul.u32 32, %s19
      %p242 = scmp.lt.s32.totalorder %s241, 63
      %s243 = scalar_select %p242, %s241, 63
      %s244 = smul.addr %s243, 8
      %s245 = scalar_lea.vmem %s0, %s244
      %s246 = smul.u32 32, %s19
      %p247 = scmp.lt.s32.totalorder %s20, 0
      %s248 = scalar_select %p247, %s20, 0
      %s249 = smul.addr %s248, 8
      %s250 = scalar_lea.vmem %s1, %s249
      %p251 = scmp.lt.s32.totalorder %s20, 0
      %s252 = scalar_select %p251, %s20, 0
      %s253 = scalar_lea.vmem %s2, %s252
      %p254 = scmp.lt.s32.totalorder %s20, 0
      %s255 = scalar_select %p254, %s20, 0
      %s256 = scalar_lea.vmem %s3, %s255
      %s257 = smul.u32 32, %s19
      %p258 = scmp.lt.s32.totalorder %s257, 63
      %s259 = scalar_select %p258, %s257, 63
      %p260 = scmp.lt.s32.totalorder %s20, 0
      %s261 = scalar_select %p260, %s20, 0
      %s262 = sadd.s32 %s261, %s259
      %s263 = smul.addr %s262, 8
      %s264 = scalar_lea.vmem %s4, %s263
      %s265 = smul.u32 32, %s19
      %v266 = vld [vmem:[%s245] sm:$0xff]
      %v267 = vld [vmem:[%s245 + $0x8] sm:$0xff]
      %v268 = vld [vmem:[%s245 + $0x10] sm:$0xff]
      %v269 = vld [vmem:[%s245 + $0x18] sm:$0xff]
      %v270 = vld [vmem:[%s245 + $0x20] sm:$0xff]
      %v271 = vld [vmem:[%s245 + $0x28] sm:$0xff]
      %v272 = vld [vmem:[%s245 + $0x30] sm:$0xff]
      %v273 = vld [vmem:[%s245 + $0x38] sm:$0xff]
      %v274 = vld [vmem:[%s245 + $0x40] sm:$0xff]
      %v275 = vld [vmem:[%s245 + $0x48] sm:$0xff]
      %v276 = vld [vmem:[%s245 + $0x50] sm:$0xff]
      %v277 = vld [vmem:[%s245 + $0x58] sm:$0xff]
      %v278 = vld [vmem:[%s245 + $0x60] sm:$0xff]
      %v279 = vld [vmem:[%s245 + $0x68] sm:$0xff]
      %v280 = vld [vmem:[%s245 + $0x70] sm:$0xff]
      %v281 = vld [vmem:[%s245 + $0x78] sm:$0xff]
      %v282 = vld [vmem:[%s245 + $0x80] sm:$0xff]
      %v283 = vld [vmem:[%s245 + $0x88] sm:$0xff]
      %v284 = vld [vmem:[%s245 + $0x90] sm:$0xff]
      %v285 = vld [vmem:[%s245 + $0x98] sm:$0xff]
      %v286 = vld [vmem:[%s245 + $0xa0] sm:$0xff]
      %v287 = vld [vmem:[%s245 + $0xa8] sm:$0xff]
      %v288 = vld [vmem:[%s245 + $0xb0] sm:$0xff]
      %v289 = vld [vmem:[%s245 + $0xb8] sm:$0xff]
      %v290 = vld [vmem:[%s245 + $0xc0] sm:$0xff]
      %v291 = vld [vmem:[%s245 + $0xc8] sm:$0xff]
      %v292 = vld [vmem:[%s245 + $0xd0] sm:$0xff]
      %v293 = vld [vmem:[%s245 + $0xd8] sm:$0xff]
      %v294 = vld [vmem:[%s245 + $0xe0] sm:$0xff]
      %v295 = vld [vmem:[%s245 + $0xe8] sm:$0xff]
      %v296 = vld [vmem:[%s245 + $0xf0] sm:$0xff]
      %v297 = vld [vmem:[%s245 + $0xf8] sm:$0xff]
      %v298 = vld [vmem:[%s250] sm:$0xff]
      %v299 = vld [vmem:[%s250 + $0x8] sm:$0xff]
      %vm300 = vcmask 130048
      %v302 = vsel %vm300, %v266, 0
      %v305 = vsel %vm300, %v267, 0
      %v308 = vsel %vm300, %v268, 0
      %v311 = vsel %vm300, %v269, 0
      %v314 = vsel %vm300, %v270, 0
      %v317 = vsel %vm300, %v271, 0
      %v320 = vsel %vm300, %v272, 0
      %v323 = vsel %vm300, %v273, 0
      %v326 = vsel %vm300, %v274, 0
      %v329 = vsel %vm300, %v275, 0
      %v332 = vsel %vm300, %v276, 0
      %v335 = vsel %vm300, %v277, 0
      %v338 = vsel %vm300, %v278, 0
      %v341 = vsel %vm300, %v279, 0
      %v344 = vsel %vm300, %v280, 0
      %v347 = vsel %vm300, %v281, 0
      %v350 = vsel %vm300, %v282, 0
      %v353 = vsel %vm300, %v283, 0
      %v356 = vsel %vm300, %v284, 0
      %v359 = vsel %vm300, %v285, 0
      %v362 = vsel %vm300, %v286, 0
      %v365 = vsel %vm300, %v287, 0
      %v368 = vsel %vm300, %v288, 0
      %v371 = vsel %vm300, %v289, 0
      %v374 = vsel %vm300, %v290, 0
      %v377 = vsel %vm300, %v291, 0
      %v380 = vsel %vm300, %v292, 0
      %v383 = vsel %vm300, %v293, 0
      %v386 = vsel %vm300, %v294, 0
      %v389 = vsel %vm300, %v295, 0
      %v392 = vsel %vm300, %v296, 0
      %v395 = vsel %vm300, %v297, 0
      %397 = vmatprep.subr.mxu0 0.0
      %398 = vmatpush1.msra.mxu0 %v298
      %399 = vmatprep.subr.mxu0 0.0
      %400 = vmatpush1.msra.mxu0 %v299
      %401 = vmatprep.subr.mxu0 0.0
      %402 = vmatpush1.msra.mxu0 0.0
      %403 = vmatprep.subr.mxu0 0.0
      %404 = vmatpush1.msra.mxu0 0.0
      %405 = vmatprep.subr.mxu0 0.0
      %406 = vmatpush1.msra.mxu0 0.0
      %407 = vmatprep.subr.mxu0 0.0
      %408 = vmatpush1.msra.mxu0 0.0
      %409 = vmatprep.subr.mxu0 0.0
      %410 = vmatpush1.msra.mxu0 0.0
      %411 = vmatprep.subr.mxu0 0.0
      %412 = vmatpush1.msra.mxu0 0.0
      %413 = vmatprep.subr.mxu0 0.0
      %414 = vmatpush1.msra.mxu0 0.0
      %415 = vmatprep.subr.mxu0 0.0
      %416 = vmatpush1.msra.mxu0 0.0
      %417 = vmatprep.subr.mxu0 0.0
      %418 = vmatpush1.msra.mxu0 0.0
      %419 = vmatprep.subr.mxu0 0.0
      %420 = vmatpush1.msra.mxu0 0.0
      %421 = vmatprep.subr.mxu0 0.0
      %422 = vmatpush1.msra.mxu0 0.0
      %423 = vmatprep.subr.mxu0 0.0
      %424 = vmatpush1.msra.mxu0 0.0
      %425 = vmatprep.subr.mxu0 0.0
      %426 = vmatpush1.msra.mxu0 0.0
      %427 = vmatprep.subr.mxu0 0.0
      %428 = vmatpush1.msra.mxu0 0.0
      %429 = vmatprep.subr.mxu0 0.0
      %430 = vmatpush1.msra.mxu0 0.0
      %431 = vmatprep.subr.mxu0 0.0
      %432 = vmatpush1.msra.mxu0 0.0
      %433 = vmatprep.subr.mxu0 0.0
      %434 = vmatpush1.msra.mxu0 0.0
      %435 = vmatprep.subr.mxu0 0.0
      %436 = vmatpush1.msra.mxu0 0.0
      %437 = vmatprep.subr.mxu0 0.0
      %438 = vmatpush1.msra.mxu0 0.0
      %439 = vmatprep.subr.mxu0 0.0
      %440 = vmatpush1.msra.mxu0 0.0
      %441 = vmatprep.subr.mxu0 0.0
      %442 = vmatpush1.msra.mxu0 0.0
      %443 = vmatprep.subr.mxu0 0.0
      %444 = vmatpush1.msra.mxu0 0.0
      %445 = vmatprep.subr.mxu0 0.0
      %446 = vmatpush1.msra.mxu0 0.0
      %447 = vmatprep.subr.mxu0 0.0
      %448 = vmatpush1.msra.mxu0 0.0
      %449 = vmatprep.subr.mxu0 0.0
      %450 = vmatpush1.msra.mxu0 0.0
      %451 = vmatprep.subr.mxu0 0.0
      %452 = vmatpush1.msra.mxu0 0.0
      %453 = vmatprep.subr.mxu0 0.0
      %454 = vmatpush1.msra.mxu0 0.0
      %455 = vmatprep.subr.mxu0 0.0
      %456 = vmatpush1.msra.mxu0 0.0
      %457 = vmatprep.subr.mxu0 0.0
      %458 = vmatpush1.msra.mxu0 0.0
      %459 = vmatprep.subr.mxu0 0.0
      %460 = vmatpush1.msra.mxu0 0.0
      %461 = vmatprep.mubr.f32.mxu0 0.0
      %462 = vmatmul.mubr.f32.gmra.mrb[0].mxu0 %v302
      %v463 = vpop.f32.mrb[0].mxu0
      %v464 = vadd.f32 0.0, %v463
      %v465 = vpop.f32.mrb[0].mxu0
      %466 = vmatprep.mubr.f32.mxu0 0.0
      %467 = vmatmul.mubr.f32.gmra.mrb[0].mxu0 %v305
      %v468 = vpop.f32.mrb[0].mxu0
      %v469 = vadd.f32 0.0, %v468
      %v470 = vpop.f32.mrb[0].mxu0
      %471 = vmatprep.mubr.f32.mxu0 0.0
      %472 = vmatmul.mubr.f32.gmra.mrb[0].mxu0 %v308
      %v473 = vpop.f32.mrb[0].mxu0
      %v474 = vadd.f32 0.0, %v473
      %v475 = vpop.f32.mrb[0].mxu0
      %476 = vmatprep.mubr.f32.mxu0 0.0
      %477 = vmatmul.mubr.f32.gmra.mrb[0].mxu0 %v311
      %v478 = vpop.f32.mrb[0].mxu0
      %v479 = vadd.f32 0.0, %v478
      %v480 = vpop.f32.mrb[0].mxu0
      %481 = vmatprep.mubr.f32.mxu0 0.0
      %482 = vmatmul.mubr.f32.gmra.mrb[0].mxu0 %v314
      %v483 = vpop.f32.mrb[0].mxu0
      %v484 = vadd.f32 0.0, %v483
      %v485 = vpop.f32.mrb[0].mxu0
      %486 = vmatprep.mubr.f32.mxu0 0.0
      %487 = vmatmul.mubr.f32.gmra.mrb[0].mxu0 %v317
      %v488 = vpop.f32.mrb[0].mxu0
      %v489 = vadd.f32 0.0, %v488
      %v490 = vpop.f32.mrb[0].mxu0
      %491 = vmatprep.mubr.f32.mxu0 0.0
      %492 = vmatmul.mubr.f32.gmra.mrb[0].mxu0 %v320
      %v493 = vpop.f32.mrb[0].mxu0
      %v494 = vadd.f32 0.0, %v493
      %v495 = vpop.f32.mrb[0].mxu0
      %496 = vmatprep.mubr.f32.mxu0 0.0
      %497 = vmatmul.mubr.f32.gmra.mrb[0].mxu0 %v323
      %v498 = vpop.f32.mrb[0].mxu0
      %v499 = vadd.f32 0.0, %v498
      %v500 = vpop.f32.mrb[0].mxu0
      %501 = vmatprep.mubr.f32.mxu0 0.0
      %502 = vmatmul.mubr.f32.gmra.mrb[0].mxu0 %v326
      %v503 = vpop.f32.mrb[0].mxu0
      %v504 = vadd.f32 0.0, %v503
      %v505 = vpop.f32.mrb[0].mxu0
      %506 = vmatprep.mubr.f32.mxu0 0.0
      %507 = vmatmul.mubr.f32.gmra.mrb[0].mxu0 %v329
      %v508 = vpop.f32.mrb[0].mxu0
      %v509 = vadd.f32 0.0, %v508
      %v510 = vpop.f32.mrb[0].mxu0
      %511 = vmatprep.mubr.f32.mxu0 0.0
      %512 = vmatmul.mubr.f32.gmra.mrb[0].mxu0 %v332
      %v513 = vpop.f32.mrb[0].mxu0
      %v514 = vadd.f32 0.0, %v513
      %v515 = vpop.f32.mrb[0].mxu0
      %516 = vmatprep.mubr.f32.mxu0 0.0
      %517 = vmatmul.mubr.f32.gmra.mrb[0].mxu0 %v335
      %v518 = vpop.f32.mrb[0].mxu0
      %v519 = vadd.f32 0.0, %v518
      %v520 = vpop.f32.mrb[0].mxu0
      %521 = vmatprep.mubr.f32.mxu0 0.0
      %522 = vmatmul.mubr.f32.gmra.mrb[0].mxu0 %v338
      %v523 = vpop.f32.mrb[0].mxu0
      %v524 = vadd.f32 0.0, %v523
      %v525 = vpop.f32.mrb[0].mxu0
      %526 = vmatprep.mubr.f32.mxu0 0.0
      %527 = vmatmul.mubr.f32.gmra.mrb[0].mxu0 %v341
      %v528 = vpop.f32.mrb[0].mxu0
      %v529 = vadd.f32 0.0, %v528
      %v530 = vpop.f32.mrb[0].mxu0
      %531 = vmatprep.mubr.f32.mxu0 0.0
      %532 = vmatmul.mubr.f32.gmra.mrb[0].mxu0 %v344
      %v533 = vpop.f32.mrb[0].mxu0
      %v534 = vadd.f32 0.0, %v533
      %v535 = vpop.f32.mrb[0].mxu0
      %536 = vmatprep.mubr.f32.mxu0 0.0
      %537 = vmatmul.mubr.f32.gmra.mrb[0].mxu0 %v347
      %v538 = vpop.f32.mrb[0].mxu0
      %v539 = vadd.f32 0.0, %v538
      %v540 = vpop.f32.mrb[0].mxu0
      %541 = vmatprep.mubr.f32.mxu0 0.0
      %542 = vmatmul.mubr.f32.gmra.mrb[0].mxu0 %v350
      %v543 = vpop.f32.mrb[0].mxu0
      %v544 = vadd.f32 0.0, %v543
      %v545 = vpop.f32.mrb[0].mxu0
      %546 = vmatprep.mubr.f32.mxu0 0.0
      %547 = vmatmul.mubr.f32.gmra.mrb[0].mxu0 %v353
      %v548 = vpop.f32.mrb[0].mxu0
      %v549 = vadd.f32 0.0, %v548
      %v550 = vpop.f32.mrb[0].mxu0
      %551 = vmatprep.mubr.f32.mxu0 0.0
      %552 = vmatmul.mubr.f32.gmra.mrb[0].mxu0 %v356
      %v553 = vpop.f32.mrb[0].mxu0
      %v554 = vadd.f32 0.0, %v553
      %v555 = vpop.f32.mrb[0].mxu0
      %556 = vmatprep.mubr.f32.mxu0 0.0
      %557 = vmatmul.mubr.f32.gmra.mrb[0].mxu0 %v359
      %v558 = vpop.f32.mrb[0].mxu0
      %v559 = vadd.f32 0.0, %v558
      %v560 = vpop.f32.mrb[0].mxu0
      %561 = vmatprep.mubr.f32.mxu0 0.0
      %562 = vmatmul.mubr.f32.gmra.mrb[0].mxu0 %v362
      %v563 = vpop.f32.mrb[0].mxu0
      %v564 = vadd.f32 0.0, %v563
      %v565 = vpop.f32.mrb[0].mxu0
      %566 = vmatprep.mubr.f32.mxu0 0.0
      %567 = vmatmul.mubr.f32.gmra.mrb[0].mxu0 %v365
      %v568 = vpop.f32.mrb[0].mxu0
      %v569 = vadd.f32 0.0, %v568
      %v570 = vpop.f32.mrb[0].mxu0
      %571 = vmatprep.mubr.f32.mxu0 0.0
      %572 = vmatmul.mubr.f32.gmra.mrb[0].mxu0 %v368
      %v573 = vpop.f32.mrb[0].mxu0
      %v574 = vadd.f32 0.0, %v573
      %v575 = vpop.f32.mrb[0].mxu0
      %576 = vmatprep.mubr.f32.mxu0 0.0
      %577 = vmatmul.mubr.f32.gmra.mrb[0].mxu0 %v371
      %v578 = vpop.f32.mrb[0].mxu0
      %v579 = vadd.f32 0.0, %v578
      %v580 = vpop.f32.mrb[0].mxu0
      %581 = vmatprep.mubr.f32.mxu0 0.0
      %582 = vmatmul.mubr.f32.gmra.mrb[0].mxu0 %v374
      %v583 = vpop.f32.mrb[0].mxu0
      %v584 = vadd.f32 0.0, %v583
      %v585 = vpop.f32.mrb[0].mxu0
      %586 = vmatprep.mubr.f32.mxu0 0.0
      %587 = vmatmul.mubr.f32.gmra.mrb[0].mxu0 %v377
      %v588 = vpop.f32.mrb[0].mxu0
      %v589 = vadd.f32 0.0, %v588
      %v590 = vpop.f32.mrb[0].mxu0
      %591 = vmatprep.mubr.f32.mxu0 0.0
      %592 = vmatmul.mubr.f32.gmra.mrb[0].mxu0 %v380
      %v593 = vpop.f32.mrb[0].mxu0
      %v594 = vadd.f32 0.0, %v593
      %v595 = vpop.f32.mrb[0].mxu0
      %596 = vmatprep.mubr.f32.mxu0 0.0
      %597 = vmatmul.mubr.f32.gmra.mrb[0].mxu0 %v383
      %v598 = vpop.f32.mrb[0].mxu0
      %v599 = vadd.f32 0.0, %v598
      %v600 = vpop.f32.mrb[0].mxu0
      %601 = vmatprep.mubr.f32.mxu0 0.0
      %602 = vmatmul.mubr.f32.gmra.mrb[0].mxu0 %v386
      %v603 = vpop.f32.mrb[0].mxu0
      %v604 = vadd.f32 0.0, %v603
      %v605 = vpop.f32.mrb[0].mxu0
      %606 = vmatprep.mubr.f32.mxu0 0.0
      %607 = vmatmul.mubr.f32.gmra.mrb[0].mxu0 %v389
      %v608 = vpop.f32.mrb[0].mxu0
      %v609 = vadd.f32 0.0, %v608
      %v610 = vpop.f32.mrb[0].mxu0
      %611 = vmatprep.mubr.f32.mxu0 0.0
      %612 = vmatmul.mubr.f32.gmra.mrb[0].mxu0 %v392
      %v613 = vpop.f32.mrb[0].mxu0
      %v614 = vadd.f32 0.0, %v613
      %v615 = vpop.f32.mrb[0].mxu0
      %616 = vmatprep.mubr.f32.mxu0 0.0
      %617 = vmatmul.mubr.f32.gmra.mrb[0].mxu0 %v395
      %v618 = vpop.f32.mrb[0].mxu0
      %v619 = vadd.f32 0.0, %v618
      %v620 = vpop.f32.mrb[0].mxu0
      %621 = vdwg.mxu0
      %v622 = vld [vmem:[%s253] sm:$0x1]
      %v624 = vlaneseq
      %v625 = vshrl.u32 %v624, 7
      %v626 = vsub.s32 0, %v625
      %v627 = vrot.slane %v622, %v626
      %v629 = vmul.f32 %v464, %v627
      %v630 = vmul.f32 %v469, %v627
      %v631 = vmul.f32 %v474, %v627
      %v632 = vmul.f32 %v479, %v627
      %v633 = vmul.f32 %v484, %v627
      %v634 = vmul.f32 %v489, %v627
      %v635 = vmul.f32 %v494, %v627
      %v636 = vmul.f32 %v499, %v627
      %v637 = vmul.f32 %v504, %v627
      %v638 = vmul.f32 %v509, %v627
      %v639 = vmul.f32 %v514, %v627
      %v640 = vmul.f32 %v519, %v627
      %v641 = vmul.f32 %v524, %v627
      %v642 = vmul.f32 %v529, %v627
      %v643 = vmul.f32 %v534, %v627
      %v644 = vmul.f32 %v539, %v627
      %v645 = vmul.f32 %v544, %v627
      %v646 = vmul.f32 %v549, %v627
      %v647 = vmul.f32 %v554, %v627
      %v648 = vmul.f32 %v559, %v627
      %v649 = vmul.f32 %v564, %v627
      %v650 = vmul.f32 %v569, %v627
      %v651 = vmul.f32 %v574, %v627
      %v652 = vmul.f32 %v579, %v627
      %v653 = vmul.f32 %v584, %v627
      %v654 = vmul.f32 %v589, %v627
      %v655 = vmul.f32 %v594, %v627
      %v656 = vmul.f32 %v599, %v627
      %v657 = vmul.f32 %v604, %v627
      %v658 = vmul.f32 %v609, %v627
      %v659 = vmul.f32 %v614, %v627
      %v660 = vmul.f32 %v619, %v627
      %v661 = vld [vmem:[%s256] sm:$0x1]
      %v663 = vlaneseq
      %v664 = vshrl.u32 %v663, 7
      %v665 = vsub.s32 0, %v664
      %v666 = vrot.slane %v661, %v665
      %v668 = vadd.f32 %v629, %v666
      %v669 = vadd.f32 %v630, %v666
      %v670 = vadd.f32 %v631, %v666
      %v671 = vadd.f32 %v632, %v666
      %v672 = vadd.f32 %v633, %v666
      %v673 = vadd.f32 %v634, %v666
      %v674 = vadd.f32 %v635, %v666
      %v675 = vadd.f32 %v636, %v666
      %v676 = vadd.f32 %v637, %v666
      %v677 = vadd.f32 %v638, %v666
      %v678 = vadd.f32 %v639, %v666
      %v679 = vadd.f32 %v640, %v666
      %v680 = vadd.f32 %v641, %v666
      %v681 = vadd.f32 %v642, %v666
      %v682 = vadd.f32 %v643, %v666
      %v683 = vadd.f32 %v644, %v666
      %v684 = vadd.f32 %v645, %v666
      %v685 = vadd.f32 %v646, %v666
      %v686 = vadd.f32 %v647, %v666
      %v687 = vadd.f32 %v648, %v666
      %v688 = vadd.f32 %v649, %v666
      %v689 = vadd.f32 %v650, %v666
      %v690 = vadd.f32 %v651, %v666
      %v691 = vadd.f32 %v652, %v666
      %v692 = vadd.f32 %v653, %v666
      %v693 = vadd.f32 %v654, %v666
      %v694 = vadd.f32 %v655, %v666
      %v695 = vadd.f32 %v656, %v666
      %v696 = vadd.f32 %v657, %v666
      %v697 = vadd.f32 %v658, %v666
      %v698 = vadd.f32 %v659, %v666
      %v699 = vadd.f32 %v660, %v666
      %v700 = vmax.f32 %v668, 0.0
      %v701 = vmax.f32 %v669, 0.0
      %v702 = vmax.f32 %v670, 0.0
      %v703 = vmax.f32 %v671, 0.0
      %v704 = vmax.f32 %v672, 0.0
      %v705 = vmax.f32 %v673, 0.0
      %v706 = vmax.f32 %v674, 0.0
      %v707 = vmax.f32 %v675, 0.0
      %v708 = vmax.f32 %v676, 0.0
      %v709 = vmax.f32 %v677, 0.0
      %v710 = vmax.f32 %v678, 0.0
      %v711 = vmax.f32 %v679, 0.0
      %v712 = vmax.f32 %v680, 0.0
      %v713 = vmax.f32 %v681, 0.0
      %v714 = vmax.f32 %v682, 0.0
      %v715 = vmax.f32 %v683, 0.0
      %v716 = vmax.f32 %v684, 0.0
      %v717 = vmax.f32 %v685, 0.0
      %v718 = vmax.f32 %v686, 0.0
      %v719 = vmax.f32 %v687, 0.0
      %v720 = vmax.f32 %v688, 0.0
      %v721 = vmax.f32 %v689, 0.0
      %v722 = vmax.f32 %v690, 0.0
      %v723 = vmax.f32 %v691, 0.0
      %v724 = vmax.f32 %v692, 0.0
      %v725 = vmax.f32 %v693, 0.0
      %v726 = vmax.f32 %v694, 0.0
      %v727 = vmax.f32 %v695, 0.0
      %v728 = vmax.f32 %v696, 0.0
      %v729 = vmax.f32 %v697, 0.0
      %v730 = vmax.f32 %v698, 0.0
      %v731 = vmax.f32 %v699, 0.0
      %vm732 = vcmask 64512
      %733 = vst.msk [vmem:[%s264] sm:$0xff] %vm732, %v700
      %734 = vst.msk [vmem:[%s264 + $0x8] sm:$0xff] %vm732, %v701
      %735 = vst.msk [vmem:[%s264 + $0x10] sm:$0xff] %vm732, %v702
      %736 = vst.msk [vmem:[%s264 + $0x18] sm:$0xff] %vm732, %v703
      %737 = vst.msk [vmem:[%s264 + $0x20] sm:$0xff] %vm732, %v704
      %738 = vst.msk [vmem:[%s264 + $0x28] sm:$0xff] %vm732, %v705
      %739 = vst.msk [vmem:[%s264 + $0x30] sm:$0xff] %vm732, %v706
      %740 = vst.msk [vmem:[%s264 + $0x38] sm:$0xff] %vm732, %v707
      %741 = vst.msk [vmem:[%s264 + $0x40] sm:$0xff] %vm732, %v708
      %742 = vst.msk [vmem:[%s264 + $0x48] sm:$0xff] %vm732, %v709
      %743 = vst.msk [vmem:[%s264 + $0x50] sm:$0xff] %vm732, %v710
      %744 = vst.msk [vmem:[%s264 + $0x58] sm:$0xff] %vm732, %v711
      %745 = vst.msk [vmem:[%s264 + $0x60] sm:$0xff] %vm732, %v712
      %746 = vst.msk [vmem:[%s264 + $0x68] sm:$0xff] %vm732, %v713
      %747 = vst.msk [vmem:[%s264 + $0x70] sm:$0xff] %vm732, %v714
      %748 = vst.msk [vmem:[%s264 + $0x78] sm:$0xff] %vm732, %v715
      %749 = vst.msk [vmem:[%s264 + $0x80] sm:$0xff] %vm732, %v716
      %750 = vst.msk [vmem:[%s264 + $0x88] sm:$0xff] %vm732, %v717
      %751 = vst.msk [vmem:[%s264 + $0x90] sm:$0xff] %vm732, %v718
      %752 = vst.msk [vmem:[%s264 + $0x98] sm:$0xff] %vm732, %v719
      %753 = vst.msk [vmem:[%s264 + $0xa0] sm:$0xff] %vm732, %v720
      %754 = vst.msk [vmem:[%s264 + $0xa8] sm:$0xff] %vm732, %v721
      %755 = vst.msk [vmem:[%s264 + $0xb0] sm:$0xff] %vm732, %v722
      %756 = vst.msk [vmem:[%s264 + $0xb8] sm:$0xff] %vm732, %v723
      %757 = vst.msk [vmem:[%s264 + $0xc0] sm:$0xff] %vm732, %v724
      %758 = vst.msk [vmem:[%s264 + $0xc8] sm:$0xff] %vm732, %v725
      %759 = vst.msk [vmem:[%s264 + $0xd0] sm:$0xff] %vm732, %v726
      %760 = vst.msk [vmem:[%s264 + $0xd8] sm:$0xff] %vm732, %v727
      %761 = vst.msk [vmem:[%s264 + $0xe0] sm:$0xff] %vm732, %v728
      %762 = vst.msk [vmem:[%s264 + $0xe8] sm:$0xff] %vm732, %v729
      %763 = vst.msk [vmem:[%s264 + $0xf0] sm:$0xff] %vm732, %v730
      %764 = vst.msk [vmem:[%s264 + $0xf8] sm:$0xff] %vm732, %v731
      %s765 = smul.u32 32, %s19
      %p766 = scmp.lt.s32.totalorder %s765, 63
      %s767 = scalar_select %p766, %s765, 63
      %p768 = scmp.lt.s32.totalorder %s20, 0
      %s769 = scalar_select %p768, %s20, 0
      %s770 = sadd.s32 %s769, %s767
      %s771 = smul.addr %s770, 8
      %s772 = scalar_lea.vmem %s4, %s771
      // Predicated region
      $region37: #{tpu_custom_call.1} parent=35 // pred_check
        %p773 = pneg %p151
      $region38: #{tpu_custom_call.1} parent=35 // pred_check_branch
        %775 = sbr.rel (%p773) target = $region40
      $region39: #{tpu_custom_call.1} parent=35 // pred_region
        %s776 = smul.u32 32, %s19
      $region40: #{tpu_custom_call.1} parent=35 // pred_fallthru
        _
    $region36: #{tpu_custom_call.1} parent=5 // pred_fallthru
      _
    %p777 = scmp.le.s32.totalorder 2, %s10
    // Predicated region
    $region41: #{tpu_custom_call.1} parent=5 // pred_check
      %p778 = pneg %p777
    $region42: #{tpu_custom_call.1} parent=5 // pred_check_branch
      %780 = sbr.rel (%p778) target = $region44
    $region43: #{tpu_custom_call.1} parent=5 // pred_region
      %s781 = ssub.s32 %s10, 2
      // Predicated region
      $region45: #{tpu_custom_call.1} parent=43 // pred_check
        %p782 = pneg %p157
      $region46: #{tpu_custom_call.1} parent=43 // pred_check_branch
        %784 = sbr.rel (%p782) target = $region48
      $region47: #{tpu_custom_call.1} parent=43 // pred_region
        %s785 = smul.u32 32, %s21
        %p786 = scmp.lt.s32.totalorder %s785, 63
        %s787 = scalar_select %p786, %s785, 63
        %p788 = scmp.lt.s32.totalorder %s22, 0
        %s789 = scalar_select %p788, %s22, 0
        %s790 = sadd.s32 %s789, %s787
        %s791 = smul.addr %s790, 8
        %s792 = scalar_lea.vmem %s4, %s791
      $region48: #{tpu_custom_call.1} parent=43 // pred_fallthru
        _
    $region44: #{tpu_custom_call.1} parent=5 // pred_fallthru
      _
  $region6: #{tpu_custom_call.1} parent=0 // loop_footer
    %s14 = sadd.s32 1, %s10
  $region7: #{tpu_custom_call.1} parent=0 // loop_footer_branch
    %9 = sbr.rel target = $region3
  $region8: #{tpu_custom_call.1} parent=0 // loop_exit
    _

</llo_original>
